<compile_context>
chip_gen: v7x
topology: tpu7x:2x2x1
jax: 0.10.0
libtpu: 0.0.40
codegen_flags: <defaults>
</compile_context>

<pallas_src>
import functools

import jax
import jax.numpy as jnp
from jax.experimental import pallas as pl
from jax.experimental.pallas import tpu as pltpu


_LANE = 128
_VMEM_LIMIT_BYTES = 48 * 1024 * 1024    # explicit scoped-VMEM limit (safe on v5e/v6e/v7x)
_VMEM_BUDGET_BYTES = 40 * 1024 * 1024   # tile-picker target (headroom for vregs/spills)


def _round_up(x, m):
    return (x + m - 1) // m * m


# --------------------------------------------------------------------------
# Kernel: one batch tile. The shared `down` intermediate is computed once and
# reused by both the up-projection and the side head (the main fusion win).
# --------------------------------------------------------------------------
def _ladder_side_kernel(x_ref, wd_ref, bd_ref, wu_ref, bu_ref,
                        w1_ref, b1_ref, w2_ref, b2_ref,
                        up_ref, side_ref):
    x = x_ref[...]                                   # [TB, F]   compute dtype
    cdt = x.dtype

    # downsample: Linear(F -> F//2), f32 accumulation on the MXU
    down_f32 = jnp.dot(x, wd_ref[...],
                       preferred_element_type=jnp.float32) + bd_ref[...]   # [TB, F//2]
    down = down_f32.astype(cdt)

    # side head: Linear(F//2 -> HIDp) -> ReLU -> Linear(HIDp -> Cp), lane-dense
    h = jnp.dot(down, w1_ref[...],
                preferred_element_type=jnp.float32) + b1_ref[...]          # [TB, HIDp]
    h = jnp.maximum(h, 0.0).astype(cdt)
    side = jnp.dot(h, w2_ref[...],
                   preferred_element_type=jnp.float32) + b2_ref[...]       # [TB, Cp]

    # upsample: Linear(F//2 -> F)
    up = jnp.dot(down, wu_ref[...],
                 preferred_element_type=jnp.float32) + bu_ref[...]         # [TB, F]

    up_ref[...] = up.astype(up_ref.dtype)
    side_ref[...] = side.astype(side_ref.dtype)


# --------------------------------------------------------------------------
# One-time parameter re-layout (done at load time, NOT per forward call):
#   * PyTorch [out, in] -> kernel [in, out] (no per-call transpose ops)
#   * zero-pad side-head lane dims (hidden, num_classes) up to 128
#   * cast weights to the compute dtype (bf16 on v6e/v7x); biases stay f32
# --------------------------------------------------------------------------
def prepare_params(params, *, compute_dtype=jnp.float32):
    F = params["w_down"].shape[1]
    Hf = params["w_down"].shape[0]              # feature_dim // 2
    HID = params["w1"].shape[0]                 # 64
    C = params["w2"].shape[0]                   # num_classes
    HIDp = _round_up(HID, _LANE)
    Cp = _round_up(C, _LANE)

    def pad2(a, rows, cols):
        return jnp.pad(a, ((0, rows - a.shape[0]), (0, cols - a.shape[1])))

    wd = params["w_down"].T.astype(compute_dtype)                        # [F, Hf]
    bd = params["b_down"].reshape(1, Hf).astype(jnp.float32)
    wu = params["w_up"].T.astype(compute_dtype)                          # [Hf, F]
    bu = params["b_up"].reshape(1, F).astype(jnp.float32)
    w1 = pad2(params["w1"].T, Hf, HIDp).astype(compute_dtype)            # [Hf, HIDp]
    b1 = pad2(params["b1"].reshape(1, HID), 1, HIDp).astype(jnp.float32)
    w2 = pad2(params["w2"].T, HIDp, Cp).astype(compute_dtype)            # [HIDp, Cp]
    b2 = pad2(params["b2"].reshape(1, C), 1, Cp).astype(jnp.float32)

    return dict(wd=wd, bd=bd, wu=wu, bu=bu, w1=w1, b1=b1, w2=w2, b2=b2)


def _pick_batch_tile(B, F, Hf, HIDp, Cp, compute_dtype):
    """Largest batch tile (multiple of the sublane pack) that fits the budget."""
    cbytes = jnp.dtype(compute_dtype).itemsize
    sub = 16 if cbytes == 2 else 8
    # resident weights (counted x2 to be conservative about pipeline buffering)
    w_bytes = 2 * cbytes * (F * Hf + Hf * F + Hf * HIDp + HIDp * Cp) \
              + 2 * 4 * (Hf + F + HIDp + Cp)

    def step_bytes(tb):
        return (w_bytes
                + 2 * tb * F * cbytes          # x double buffer
                + 2 * tb * F * 4               # up double buffer (f32 out)
                + 2 * tb * Cp * 4              # side double buffer
                + tb * (Hf + HIDp) * 4)        # live intermediates

    tb = max(sub, (min(B, 1024) // sub) * sub)
    while tb > sub and step_bytes(tb) > _VMEM_BUDGET_BYTES:
        tb = max(sub, ((tb // 2) // sub) * sub)
    if tb >= B:
        return B                               # single full block (legal: full dim)
    return tb


def ladder_side_forward(x, prep, num_classes, main_output=None, target_logits=None,
                        *, block_batch=None):
    """Pallas forward of LadderSideModule. Returns (up, side_output).

    x: [B, F]; prep: output of prepare_params(); num_classes: static int.
    main_output / target_logits accepted for signature parity (loss-only, unused).
    """
    del main_output, target_logits

    wd, bd, wu, bu = prep["wd"], prep["bd"], prep["wu"], prep["bu"]
    w1, b1, w2, b2 = prep["w1"], prep["b1"], prep["w2"], prep["b2"]

    B, F = x.shape
    Hf = wd.shape[1]
    HIDp = w1.shape[1]
    Cp = w2.shape[1]
    cdt = wd.dtype

    x = x.astype(cdt)                          # bf16 stream if compute dtype is bf16

    sub = 16 if jnp.dtype(cdt).itemsize == 2 else 8
    if block_batch is not None:
        TB = min(block_batch, B)
        if TB < B:
            TB = max(sub, (TB // sub) * sub)
    else:
        TB = _pick_batch_tile(B, F, Hf, HIDp, Cp, cdt)

    grid = (pl.cdiv(B, TB),)

    stream = lambda i: (i, 0)                  # batch-tiled activations
    resident = lambda i: (0, 0)                # weights/biases stay in VMEM

    in_specs = [
        pl.BlockSpec((TB, F), stream),         # x
        pl.BlockSpec((F, Hf), resident),       # wd
        pl.BlockSpec((1, Hf), resident),       # bd
        pl.BlockSpec((Hf, F), resident),       # wu
        pl.BlockSpec((1, F), resident),        # bu
        pl.BlockSpec((Hf, HIDp), resident),    # w1
        pl.BlockSpec((1, HIDp), resident),     # b1
        pl.BlockSpec((HIDp, Cp), resident),    # w2
        pl.BlockSpec((1, Cp), resident),       # b2
    ]
    out_specs = (
        pl.BlockSpec((TB, F), stream),         # up
        pl.BlockSpec((TB, Cp), stream),        # side (lane-padded to 128)
    )

    up, side_pad = pl.pallas_call(
        _ladder_side_kernel,
        out_shape=(
            jax.ShapeDtypeStruct((B, F), jnp.float32),
            jax.ShapeDtypeStruct((B, Cp), jnp.float32),
        ),
        grid_spec=pltpu.PrefetchScalarGridSpec(
            num_scalar_prefetch=0,
            grid=grid,
            in_specs=in_specs,
            out_specs=out_specs,
        ),
        compiler_params=pltpu.CompilerParams(
            dimension_semantics=("parallel",),       # shard batch tiles over TCs (v7x)
            vmem_limit_bytes=_VMEM_LIMIT_BYTES,
        ),
    )(x, wd, bd, wu, bu, w1, b1, w2, b2)

    return up, side_pad[:, :num_classes]


# --------------------------------------------------------------------------
# Demo / correctness harness
# --------------------------------------------------------------------------
def init_params(key, feature_dim, num_classes, hidden=64):
    """Deterministic synthetic init (PyTorch-layout shapes: [out, in])."""
    half = feature_dim // 2
    ks = jax.random.split(key, 8)

    def lin(kw, kb, out_d, in_d):
        bound = 1.0 / jnp.sqrt(in_d)
        w = jax.random.uniform(kw, (out_d, in_d), jnp.float32, -bound, bound)
        b = jax.random.uniform(kb, (out_d,), jnp.float32, -bound, bound)
        return w, b

    w_down, b_down = lin(ks[0], ks[1], half, feature_dim)
    w_up,   b_up   = lin(ks[2], ks[3], feature_dim, half)
    w1,     b1     = lin(ks[4], ks[5], hidden, half)
    w2,     b2     = lin(ks[6], ks[7], num_classes, hidden)
    return dict(w_down=w_down, b_down=b_down, w_up=w_up, b_up=b_up,
                w1=w1, b1=b1, w2=w2, b2=b2)


def _reference(x, p):
    down = x @ p["w_down"].T + p["b_down"]
    h = jnp.maximum(down @ p["w1"].T + p["b1"], 0.0)
    side = h @ p["w2"].T + p["b2"]
    up = down @ p["w_up"].T + p["b_up"]
    return up, side


if __name__ == "__main__":
    key = jax.random.PRNGKey(0)
    k_x, k_p, k_m, k_t = jax.random.split(key, 4)

    batch, feature_dim, num_classes = 32, 32, 10
    x = jax.random.normal(k_x, (batch, feature_dim), jnp.float32)
    main_output = jax.random.normal(k_m, (batch, num_classes), jnp.float32)
    target_logits = jax.random.normal(k_t, (batch, num_classes), jnp.float32)

    params = init_params(k_p, feature_dim, num_classes)
    up_ref, side_ref = _reference(x, params)

    # f32 compute path: batch-tiled grid of 4 steps, exact numerics.
    prep_f32 = prepare_params(params, compute_dtype=jnp.float32)
    fwd_f32 = jax.jit(lambda xx, pp, mo, tl: ladder_side_forward(
        xx, pp, num_classes, mo, tl, block_batch=8))
    up32, side32 = fwd_f32(x, prep_f32, main_output, target_logits)
    up32 = jax.block_until_ready(up32)
    side32 = jax.block_until_ready(side32)
    assert up32.shape == (batch, feature_dim)
    assert side32.shape == (batch, num_classes)
    assert jnp.allclose(up32, up_ref, atol=1e-5, rtol=1e-5)
    assert jnp.allclose(side32, side_ref, atol=1e-5, rtol=1e-5)

    # bf16 compute path (MXU-friendly on v6e/v7x), f32 accumulation, looser tol.
    prep_bf16 = prepare_params(params, compute_dtype=jnp.bfloat16)
    fwd_bf16 = jax.jit(lambda xx, pp, mo, tl: ladder_side_forward(
        xx, pp, num_classes, mo, tl, block_batch=16))
    up16, side16 = fwd_bf16(x, prep_bf16, main_output, target_logits)
    up16 = jax.block_until_ready(up16)
    side16 = jax.block_until_ready(side16)
    assert jnp.allclose(up16, up_ref, atol=1e-1, rtol=1e-1)
    assert jnp.allclose(side16, side_ref, atol=1e-1, rtol=1e-1)

    print("KERNEL_OK")
</pallas_src>

<mosaic_0001>
module attributes {stable_mosaic.version = 11 : i64} {
  func.func @_ladder_side_kernel(%arg0: i32, %arg1: memref<8x32xf32, #tpu.memory_space<vmem>>, %arg2: memref<32x16xf32, #tpu.memory_space<vmem>>, %arg3: memref<1x16xf32, #tpu.memory_space<vmem>>, %arg4: memref<16x32xf32, #tpu.memory_space<vmem>>, %arg5: memref<1x32xf32, #tpu.memory_space<vmem>>, %arg6: memref<16x128xf32, #tpu.memory_space<vmem>>, %arg7: memref<1x128xf32, #tpu.memory_space<vmem>>, %arg8: memref<128x128xf32, #tpu.memory_space<vmem>>, %arg9: memref<1x128xf32, #tpu.memory_space<vmem>>, %arg10: memref<8x32xf32, #tpu.memory_space<vmem>>, %arg11: memref<8x128xf32, #tpu.memory_space<vmem>>) attributes {dimension_semantics = [#tpu.dimension_semantics<parallel>], iteration_bounds = array<i64: 4>, scalar_prefetch = 0 : i64, scratch_operands = 0 : i64, tpu.core_type = #tpu.core_type<tc>, window_params = [{transform_indices = @transform_0, window_bounds = array<i64: 8, 32>}, {pipeline_mode = #tpu.pipeline_mode<synchronous>, transform_indices = @transform_1, window_bounds = array<i64: 32, 16>}, {pipeline_mode = #tpu.pipeline_mode<synchronous>, transform_indices = @transform_2, window_bounds = array<i64: 1, 16>}, {pipeline_mode = #tpu.pipeline_mode<synchronous>, transform_indices = @transform_3, window_bounds = array<i64: 16, 32>}, {pipeline_mode = #tpu.pipeline_mode<synchronous>, transform_indices = @transform_4, window_bounds = array<i64: 1, 32>}, {pipeline_mode = #tpu.pipeline_mode<synchronous>, transform_indices = @transform_5, window_bounds = array<i64: 16, 128>}, {pipeline_mode = #tpu.pipeline_mode<synchronous>, transform_indices = @transform_6, window_bounds = array<i64: 1, 128>}, {pipeline_mode = #tpu.pipeline_mode<synchronous>, transform_indices = @transform_7, window_bounds = array<i64: 128, 128>}, {pipeline_mode = #tpu.pipeline_mode<synchronous>, transform_indices = @transform_8, window_bounds = array<i64: 1, 128>}, {transform_indices = @transform_9, window_bounds = array<i64: 8, 32>}, {transform_indices = @transform_10, window_bounds = array<i64: 8, 128>}]} {
    %c0 = arith.constant 0 : index
    %c0_0 = arith.constant 0 : index
    %0 = vector.load %arg1[%c0, %c0_0] : memref<8x32xf32, #tpu.memory_space<vmem>>, vector<8x32xf32>
    %c0_1 = arith.constant 0 : index
    %c0_2 = arith.constant 0 : index
    %1 = vector.load %arg2[%c0_1, %c0_2] : memref<32x16xf32, #tpu.memory_space<vmem>>, vector<32x16xf32>
    %cst = arith.constant dense<0.000000e+00> : vector<8x16xf32>
    %2 = tpu.matmul %0, %1, %cst {dimension_numbers = #tpu.dot_dimension_numbers<[1], [0], [0], [1], [0, 0, 1, 1], [], []>} : vector<8x32xf32>, vector<32x16xf32>, vector<8x16xf32> -> vector<8x16xf32>
    %c0_3 = arith.constant 0 : index
    %c0_4 = arith.constant 0 : index
    %3 = vector.load %arg3[%c0_3, %c0_4] : memref<1x16xf32, #tpu.memory_space<vmem>>, vector<1x16xf32>
    %4 = vector.broadcast %3 : vector<1x16xf32> to vector<8x16xf32>
    %5 = arith.addf %2, %4 : vector<8x16xf32>
    %c0_5 = arith.constant 0 : index
    %c0_6 = arith.constant 0 : index
    %6 = vector.load %arg6[%c0_5, %c0_6] : memref<16x128xf32, #tpu.memory_space<vmem>>, vector<16x128xf32>
    %cst_7 = arith.constant dense<0.000000e+00> : vector<8x128xf32>
    %7 = tpu.matmul %5, %6, %cst_7 {dimension_numbers = #tpu.dot_dimension_numbers<[1], [0], [0], [1], [0, 0, 1, 1], [], []>} : vector<8x16xf32>, vector<16x128xf32>, vector<8x128xf32> -> vector<8x128xf32>
    %c0_8 = arith.constant 0 : index
    %c0_9 = arith.constant 0 : index
    %8 = vector.load %arg7[%c0_8, %c0_9] : memref<1x128xf32, #tpu.memory_space<vmem>>, vector<1x128xf32>
    %9 = vector.broadcast %8 : vector<1x128xf32> to vector<8x128xf32>
    %10 = arith.addf %7, %9 : vector<8x128xf32>
    %cst_10 = arith.constant 0.000000e+00 : f32
    %11 = vector.broadcast %cst_10 : f32 to vector<8x128xf32>
    %12 = arith.maximumf %10, %11 : vector<8x128xf32>
    %c0_11 = arith.constant 0 : index
    %c0_12 = arith.constant 0 : index
    %13 = vector.load %arg8[%c0_11, %c0_12] : memref<128x128xf32, #tpu.memory_space<vmem>>, vector<128x128xf32>
    %cst_13 = arith.constant dense<0.000000e+00> : vector<8x128xf32>
    %14 = tpu.matmul %12, %13, %cst_13 {dimension_numbers = #tpu.dot_dimension_numbers<[1], [0], [0], [1], [0, 0, 1, 1], [], []>} : vector<8x128xf32>, vector<128x128xf32>, vector<8x128xf32> -> vector<8x128xf32>
    %c0_14 = arith.constant 0 : index
    %c0_15 = arith.constant 0 : index
    %15 = vector.load %arg9[%c0_14, %c0_15] : memref<1x128xf32, #tpu.memory_space<vmem>>, vector<1x128xf32>
    %16 = vector.broadcast %15 : vector<1x128xf32> to vector<8x128xf32>
    %17 = arith.addf %14, %16 : vector<8x128xf32>
    %c0_16 = arith.constant 0 : index
    %c0_17 = arith.constant 0 : index
    %18 = vector.load %arg4[%c0_16, %c0_17] : memref<16x32xf32, #tpu.memory_space<vmem>>, vector<16x32xf32>
    %cst_18 = arith.constant dense<0.000000e+00> : vector<8x32xf32>
    %19 = tpu.matmul %5, %18, %cst_18 {dimension_numbers = #tpu.dot_dimension_numbers<[1], [0], [0], [1], [0, 0, 1, 1], [], []>} : vector<8x16xf32>, vector<16x32xf32>, vector<8x32xf32> -> vector<8x32xf32>
    %c0_19 = arith.constant 0 : index
    %c0_20 = arith.constant 0 : index
    %20 = vector.load %arg5[%c0_19, %c0_20] : memref<1x32xf32, #tpu.memory_space<vmem>>, vector<1x32xf32>
    %21 = vector.broadcast %20 : vector<1x32xf32> to vector<8x32xf32>
    %22 = arith.addf %19, %21 : vector<8x32xf32>
    %c0_21 = arith.constant 0 : index
    %c0_22 = arith.constant 0 : index
    %23 = vector.load %arg10[%c0_21, %c0_22] : memref<8x32xf32, #tpu.memory_space<vmem>>, vector<8x32xf32>
    tpu.vector_store %arg10[%c0_21, %c0_22], %22 {strides = array<i32>} : memref<8x32xf32, #tpu.memory_space<vmem>>, vector<8x32xf32>,
    %c0_23 = arith.constant 0 : index
    %c0_24 = arith.constant 0 : index
    %24 = vector.load %arg11[%c0_23, %c0_24] : memref<8x128xf32, #tpu.memory_space<vmem>>, vector<8x128xf32>
    tpu.vector_store %arg11[%c0_23, %c0_24], %17 {strides = array<i32>} : memref<8x128xf32, #tpu.memory_space<vmem>>, vector<8x128xf32>,
    return
  }
  func.func @transform_0(%arg0: i32) -> (i32, i32) {
    %c0_i32 = arith.constant 0 : i32
    %c0_i32_0 = arith.constant 0 : i32
    return %arg0, %c0_i32 : i32, i32
  }
  func.func @transform_1(%arg0: i32) -> (i32, i32) {
    %c0_i32 = arith.constant 0 : i32
    %c0_i32_0 = arith.constant 0 : i32
    %c0_i32_1 = arith.constant 0 : i32
    return %c0_i32, %c0_i32_0 : i32, i32
  }
  func.func @transform_2(%arg0: i32) -> (i32, i32) {
    %c0_i32 = arith.constant 0 : i32
    %c0_i32_0 = arith.constant 0 : i32
    %c0_i32_1 = arith.constant 0 : i32
    return %c0_i32, %c0_i32_0 : i32, i32
  }
  func.func @transform_3(%arg0: i32) -> (i32, i32) {
    %c0_i32 = arith.constant 0 : i32
    %c0_i32_0 = arith.constant 0 : i32
    %c0_i32_1 = arith.constant 0 : i32
    return %c0_i32, %c0_i32_0 : i32, i32
  }
  func.func @transform_4(%arg0: i32) -> (i32, i32) {
    %c0_i32 = arith.constant 0 : i32
    %c0_i32_0 = arith.constant 0 : i32
    %c0_i32_1 = arith.constant 0 : i32
    return %c0_i32, %c0_i32_0 : i32, i32
  }
  func.func @transform_5(%arg0: i32) -> (i32, i32) {
    %c0_i32 = arith.constant 0 : i32
    %c0_i32_0 = arith.constant 0 : i32
    %c0_i32_1 = arith.constant 0 : i32
    return %c0_i32, %c0_i32_0 : i32, i32
  }
  func.func @transform_6(%arg0: i32) -> (i32, i32) {
    %c0_i32 = arith.constant 0 : i32
    %c0_i32_0 = arith.constant 0 : i32
    %c0_i32_1 = arith.constant 0 : i32
    return %c0_i32, %c0_i32_0 : i32, i32
  }
  func.func @transform_7(%arg0: i32) -> (i32, i32) {
    %c0_i32 = arith.constant 0 : i32
    %c0_i32_0 = arith.constant 0 : i32
    %c0_i32_1 = arith.constant 0 : i32
    return %c0_i32, %c0_i32_0 : i32, i32
  }
  func.func @transform_8(%arg0: i32) -> (i32, i32) {
    %c0_i32 = arith.constant 0 : i32
    %c0_i32_0 = arith.constant 0 : i32
    %c0_i32_1 = arith.constant 0 : i32
    return %c0_i32, %c0_i32_0 : i32, i32
  }
  func.func @transform_9(%arg0: i32) -> (i32, i32) {
    %c0_i32 = arith.constant 0 : i32
    %c0_i32_0 = arith.constant 0 : i32
    return %arg0, %c0_i32 : i32, i32
  }
  func.func @transform_10(%arg0: i32) -> (i32, i32) {
    %c0_i32 = arith.constant 0 : i32
    %c0_i32_0 = arith.constant 0 : i32
    return %arg0, %c0_i32 : i32, i32
  }
}

</mosaic_0001>

<llo_original>
// kernel: _lambda_.1
$region0: #{_lambda_.1}
  #allocation0 [shape = 'u32[]', space=smem, size = 0x4, offset = 0x4, fixed_abs, tag = 'smem constant byte address 0x4 - core index']
  #allocation1 [shape = 'u32[144,128]{1,0:T(1,128)}', space=vmem, size = 0x12000, scoped, tag = 'internal scratch']
  %s0 = inlined_call_operand.vmem [shape: f32[32,32], index: 0, kind: input, shape index: {}]
  %s1 = inlined_call_operand.vmem [shape: f32[32,16], index: 1, kind: input, shape index: {}]
  %s2 = inlined_call_operand.vmem [shape: f32[1,16], index: 2, kind: input, shape index: {}]
  %s3 = inlined_call_operand.vmem [shape: f32[16,32], index: 3, kind: input, shape index: {}]
  %s4 = inlined_call_operand.vmem [shape: f32[1,32], index: 4, kind: input, shape index: {}]
  %s5 = inlined_call_operand.vmem [shape: f32[16,128], index: 5, kind: input, shape index: {}]
  %s6 = inlined_call_operand.hbm [shape: f32[1,128], index: 6, kind: input, shape index: {}]
  %s7 = inlined_call_operand.hbm [shape: f32[128,128], index: 7, kind: input, shape index: {}]
  %s8 = inlined_call_operand.hbm [shape: f32[1,128], index: 8, kind: input, shape index: {}]
  %s9 = inlined_call_operand.hbm [shape: f32[32,32], index: 9, kind: output, shape index: {0}]
  %s10 = inlined_call_operand.vmem [shape: f32[32,128], index: 10, kind: output, shape index: {1}]
  %11 = xla_tuple %s9, %s10
  %s12 = sld [smem:[#allocation0]]
  $region89: #{_lambda_.1} parent=0
    _
  %s14 = ssub.s32 1, %s12
  %s15 = scalar_select 0, %s14, %s12
  $region1: #{_lambda_.1} parent=0
    #allocation2 [shape = 'u8[512]{0}', space=vmem, size = 0x400, scoped, tag = 'input window, operand 6, single buffered']
    #allocation3 [shape = 's32[2]{0}', space=sflag, size = 0x8, scoped, tag = 'scoped memory for _lambda_.1']
    #allocation4 [shape = 's32[2]{0}', space=sflag, size = 0x8, scoped, tag = 'scoped memory for _lambda_.1']
    #allocation5 [shape = 'u8[65536]{0}', space=vmem, size = 0x10000, scoped, tag = 'input window, operand 7, single buffered']
    #allocation6 [shape = 's32[1]{0}', space=sflag, size = 0x4, scoped, tag = 'scoped memory for _lambda_.1']
    #allocation7 [shape = 'u8[512]{0}', space=vmem, size = 0x400, scoped, tag = 'input window, operand 8, single buffered']
    #allocation8 [shape = 'u8[8192]{0}', space=vmem, size = 0x2000, scoped, tag = 'output window, operand 0']
    %16 = vsyncpa [#allocation3], 0
    %17 = vsyncpa [#allocation6], 0
    %18 = vsyncpa [#allocation4], 0
    %s19 = scalar_lea.sflag [#allocation4], 1
    %20 = vsyncpa %s19, 0
    loop: start=0, step=1, limit=6
    $region2: #{_lambda_.1} parent=1 // loop_pre_header
      _
    $region3: #{_lambda_.1} parent=1 // loop_header
      %s22 = sphi 0, %s26
      %p23 = scmp.ge.s32.totalorder %s22, 6
      %s32 = sphi 0, %s34
      %s35 = sphi 0, %s32
      %s36 = sphi 0, %s35
      %s52 = sphi 0, %s36
      %s56 = sphi 0, %s56
      %s58 = sphi 0, %s56
      %s59 = sphi 0, %s58
      %s73 = sphi 0, %s59
      %s77 = sphi 0, %s77
      %s79 = sphi 0, %s77
      %s80 = sphi 0, %s79
      %s94 = sphi 0, %s80
      %s98 = sphi 0, %s98
      %s100 = sphi 0, %s98
      %s101 = sphi 0, %s100
      %s115 = sphi 0, %s101
      %s119 = sphi 0, %s119
      %s121 = sphi 0, %s119
      %s122 = sphi 0, %s121
      %s136 = sphi 0, %s122
      %s140 = sphi 0, %s140
      %s142 = sphi 0, %s140
      %s143 = sphi 0, %s142
      %s157 = sphi 0, %s143
      %s161 = sphi 0, %s161
      %s163 = sphi 0, %s161
      %s164 = sphi 0, %s163
      %s178 = sphi 0, %s164
      %s182 = sphi 0, %s182
      %s184 = sphi 0, %s182
      %s185 = sphi 0, %s184
      %s199 = sphi 0, %s185
      %s203 = sphi 0, %s203
      %s205 = sphi 0, %s203
      %s206 = sphi 0, %s205
      %s220 = sphi 0, %s206
      %s226 = sphi 0, %s228
      %s229 = sphi 0, %s226
      %s230 = sphi 0, %s229
      %s246 = sphi 0, %s230
      %s252 = sphi 0, %s254
      %s255 = sphi 0, %s252
      %s256 = sphi 0, %s255
      %s272 = sphi 0, %s256
    $region4: #{_lambda_.1} parent=1 // loop_header_branch
      %25 = sbr.rel (%p23) target = $region8
    $region5: #{_lambda_.1} parent=1 // loop_body
      %s27 = ssub.s32 %s22, 1
      %s28 = ssub.s32 %s22, 2
      %s29 = sadd.s32 %s22, 1
      %s30 = ssub.s32 %s22, %s29
      %p31 = scmp.eq.s32.totalorder %s30, 0
      %s33 = sadd.s32 %s32, 1
      %s34 = scalar_select %p31, %s32, %s33
      %p37 = pneg %p31
      %p38 = scmp.eq.s32.totalorder %s22, 3
      %p39 = por %p37, %p38
      %p40 = scmp.ne.s32.totalorder %s32, %s35
      %p41 = scmp.eq.s32.totalorder %s22, 0
      %p42 = por %p40, %p41
      %p43 = scmp.ne.s32.totalorder %s32, %s35
      %p44 = scmp.eq.s32.totalorder %s27, 3
      %p45 = por %p43, %p44
      %p46 = scmp.ne.s32.totalorder %s35, %s36
      %p47 = scmp.eq.s32.totalorder %s27, 0
      %p48 = por %p46, %p47
      %p49 = scmp.ne.s32.totalorder %s35, %s36
      %p50 = scmp.eq.s32.totalorder %s28, 3
      %p51 = por %p49, %p50
      %p53 = scmp.ne.s32.totalorder %s36, %s52
      %p54 = scmp.eq.s32.totalorder %s28, 0
      %p55 = por %p53, %p54
      %s57 = sadd.s32 %s56, 1
      %p60 = scmp.eq.s32.totalorder %s22, 3
      %p61 = scmp.ne.s32.totalorder %s56, %s58
      %p62 = scmp.eq.s32.totalorder %s22, 0
      %p63 = por %p61, %p62
      %p64 = scmp.ne.s32.totalorder %s56, %s58
      %p65 = scmp.eq.s32.totalorder %s27, 3
      %p66 = por %p64, %p65
      %p67 = scmp.ne.s32.totalorder %s58, %s59
      %p68 = scmp.eq.s32.totalorder %s27, 0
      %p69 = por %p67, %p68
      %p70 = scmp.ne.s32.totalorder %s58, %s59
      %p71 = scmp.eq.s32.totalorder %s28, 3
      %p72 = por %p70, %p71
      %p74 = scmp.ne.s32.totalorder %s59, %s73
      %p75 = scmp.eq.s32.totalorder %s28, 0
      %p76 = por %p74, %p75
      %s78 = sadd.s32 %s77, 1
      %p81 = scmp.eq.s32.totalorder %s22, 3
      %p82 = scmp.ne.s32.totalorder %s77, %s79
      %p83 = scmp.eq.s32.totalorder %s22, 0
      %p84 = por %p82, %p83
      %p85 = scmp.ne.s32.totalorder %s77, %s79
      %p86 = scmp.eq.s32.totalorder %s27, 3
      %p87 = por %p85, %p86
      %p88 = scmp.ne.s32.totalorder %s79, %s80
      %p89 = scmp.eq.s32.totalorder %s27, 0
      %p90 = por %p88, %p89
      %p91 = scmp.ne.s32.totalorder %s79, %s80
      %p92 = scmp.eq.s32.totalorder %s28, 3
      %p93 = por %p91, %p92
      %p95 = scmp.ne.s32.totalorder %s80, %s94
      %p96 = scmp.eq.s32.totalorder %s28, 0
      %p97 = por %p95, %p96
      %s99 = sadd.s32 %s98, 1
      %p102 = scmp.eq.s32.totalorder %s22, 3
      %p103 = scmp.ne.s32.totalorder %s98, %s100
      %p104 = scmp.eq.s32.totalorder %s22, 0
      %p105 = por %p103, %p104
      %p106 = scmp.ne.s32.totalorder %s98, %s100
      %p107 = scmp.eq.s32.totalorder %s27, 3
      %p108 = por %p106, %p107
      %p109 = scmp.ne.s32.totalorder %s100, %s101
      %p110 = scmp.eq.s32.totalorder %s27, 0
      %p111 = por %p109, %p110
      %p112 = scmp.ne.s32.totalorder %s100, %s101
      %p113 = scmp.eq.s32.totalorder %s28, 3
      %p114 = por %p112, %p113
      %p116 = scmp.ne.s32.totalorder %s101, %s115
      %p117 = scmp.eq.s32.totalorder %s28, 0
      %p118 = por %p116, %p117
      %s120 = sadd.s32 %s119, 1
      %p123 = scmp.eq.s32.totalorder %s22, 3
      %p124 = scmp.ne.s32.totalorder %s119, %s121
      %p125 = scmp.eq.s32.totalorder %s22, 0
      %p126 = por %p124, %p125
      %p127 = scmp.ne.s32.totalorder %s119, %s121
      %p128 = scmp.eq.s32.totalorder %s27, 3
      %p129 = por %p127, %p128
      %p130 = scmp.ne.s32.totalorder %s121, %s122
      %p131 = scmp.eq.s32.totalorder %s27, 0
      %p132 = por %p130, %p131
      %p133 = scmp.ne.s32.totalorder %s121, %s122
      %p134 = scmp.eq.s32.totalorder %s28, 3
      %p135 = por %p133, %p134
      %p137 = scmp.ne.s32.totalorder %s122, %s136
      %p138 = scmp.eq.s32.totalorder %s28, 0
      %p139 = por %p137, %p138
      %s141 = sadd.s32 %s140, 1
      %p144 = scmp.eq.s32.totalorder %s22, 3
      %p145 = scmp.ne.s32.totalorder %s140, %s142
      %p146 = scmp.eq.s32.totalorder %s22, 0
      %p147 = por %p145, %p146
      %p148 = scmp.ne.s32.totalorder %s140, %s142
      %p149 = scmp.eq.s32.totalorder %s27, 3
      %p150 = por %p148, %p149
      %p151 = scmp.ne.s32.totalorder %s142, %s143
      %p152 = scmp.eq.s32.totalorder %s27, 0
      %p153 = por %p151, %p152
      %p154 = scmp.ne.s32.totalorder %s142, %s143
      %p155 = scmp.eq.s32.totalorder %s28, 3
      %p156 = por %p154, %p155
      %p158 = scmp.ne.s32.totalorder %s143, %s157
      %p159 = scmp.eq.s32.totalorder %s28, 0
      %p160 = por %p158, %p159
      %s162 = sadd.s32 %s161, 1
      %p165 = scmp.eq.s32.totalorder %s22, 3
      %p166 = scmp.ne.s32.totalorder %s161, %s163
      %p167 = scmp.eq.s32.totalorder %s22, 0
      %p168 = por %p166, %p167
      %p169 = scmp.ne.s32.totalorder %s161, %s163
      %p170 = scmp.eq.s32.totalorder %s27, 3
      %p171 = por %p169, %p170
      %p172 = scmp.ne.s32.totalorder %s163, %s164
      %p173 = scmp.eq.s32.totalorder %s27, 0
      %p174 = por %p172, %p173
      %p175 = scmp.ne.s32.totalorder %s163, %s164
      %p176 = scmp.eq.s32.totalorder %s28, 3
      %p177 = por %p175, %p176
      %p179 = scmp.ne.s32.totalorder %s164, %s178
      %p180 = scmp.eq.s32.totalorder %s28, 0
      %p181 = por %p179, %p180
      %s183 = sadd.s32 %s182, 1
      %p186 = scmp.eq.s32.totalorder %s22, 3
      %p187 = scmp.ne.s32.totalorder %s182, %s184
      %p188 = scmp.eq.s32.totalorder %s22, 0
      %p189 = por %p187, %p188
      %p190 = scmp.ne.s32.totalorder %s182, %s184
      %p191 = scmp.eq.s32.totalorder %s27, 3
      %p192 = por %p190, %p191
      %p193 = scmp.ne.s32.totalorder %s184, %s185
      %p194 = scmp.eq.s32.totalorder %s27, 0
      %p195 = por %p193, %p194
      %p196 = scmp.ne.s32.totalorder %s184, %s185
      %p197 = scmp.eq.s32.totalorder %s28, 3
      %p198 = por %p196, %p197
      %p200 = scmp.ne.s32.totalorder %s185, %s199
      %p201 = scmp.eq.s32.totalorder %s28, 0
      %p202 = por %p200, %p201
      %s204 = sadd.s32 %s203, 1
      %p207 = scmp.eq.s32.totalorder %s22, 3
      %p208 = scmp.ne.s32.totalorder %s203, %s205
      %p209 = scmp.eq.s32.totalorder %s22, 0
      %p210 = por %p208, %p209
      %p211 = scmp.ne.s32.totalorder %s203, %s205
      %p212 = scmp.eq.s32.totalorder %s27, 3
      %p213 = por %p211, %p212
      %p214 = scmp.ne.s32.totalorder %s205, %s206
      %p215 = scmp.eq.s32.totalorder %s27, 0
      %p216 = por %p214, %p215
      %p217 = scmp.ne.s32.totalorder %s205, %s206
      %p218 = scmp.eq.s32.totalorder %s28, 3
      %p219 = por %p217, %p218
      %p221 = scmp.ne.s32.totalorder %s206, %s220
      %p222 = scmp.eq.s32.totalorder %s28, 0
      %p223 = por %p221, %p222
      %s224 = ssub.s32 %s22, %s29
      %p225 = scmp.eq.s32.totalorder %s224, 0
      %s227 = sadd.s32 %s226, 1
      %s228 = scalar_select %p225, %s226, %s227
      %p231 = pneg %p225
      %p232 = scmp.eq.s32.totalorder %s22, 3
      %p233 = por %p231, %p232
      %p234 = scmp.ne.s32.totalorder %s226, %s229
      %p235 = scmp.eq.s32.totalorder %s22, 0
      %p236 = por %p234, %p235
      %p237 = scmp.ne.s32.totalorder %s226, %s229
      %p238 = scmp.eq.s32.totalorder %s27, 3
      %p239 = por %p237, %p238
      %p240 = scmp.ne.s32.totalorder %s229, %s230
      %p241 = scmp.eq.s32.totalorder %s27, 0
      %p242 = por %p240, %p241
      %p243 = scmp.ne.s32.totalorder %s229, %s230
      %p244 = scmp.eq.s32.totalorder %s28, 3
      %p245 = por %p243, %p244
      %p247 = scmp.ne.s32.totalorder %s230, %s246
      %p248 = scmp.eq.s32.totalorder %s28, 0
      %p249 = por %p247, %p248
      %s250 = ssub.s32 %s22, %s29
      %p251 = scmp.eq.s32.totalorder %s250, 0
      %s253 = sadd.s32 %s252, 1
      %s254 = scalar_select %p251, %s252, %s253
      %p257 = pneg %p251
      %p258 = scmp.eq.s32.totalorder %s22, 3
      %p259 = por %p257, %p258
      %p260 = scmp.ne.s32.totalorder %s252, %s255
      %p261 = scmp.eq.s32.totalorder %s22, 0
      %p262 = por %p260, %p261
      %p263 = scmp.ne.s32.totalorder %s252, %s255
      %p264 = scmp.eq.s32.totalorder %s27, 3
      %p265 = por %p263, %p264
      %p266 = scmp.ne.s32.totalorder %s255, %s256
      %p267 = scmp.eq.s32.totalorder %s27, 0
      %p268 = por %p266, %p267
      %p269 = scmp.ne.s32.totalorder %s255, %s256
      %p270 = scmp.eq.s32.totalorder %s28, 3
      %p271 = por %p269, %p270
      %p273 = scmp.ne.s32.totalorder %s256, %s272
      %p274 = scmp.eq.s32.totalorder %s28, 0
      %p275 = por %p273, %p274
      %p276 = scmp.le.s32.totalorder 1, %s22
      %p277 = scmp.lt.s32.totalorder %s22, 5
      %p278 = pnand %p276, %p277
      %p279 = pneg %p278
      // Predicated region
      $region9: #{_lambda_.1} parent=5 // pred_check
        _
      $region10: #{_lambda_.1} parent=5 // pred_check_branch
        %281 = sbr.rel (%p278) target = $region12
      $region11: #{_lambda_.1} parent=5 // pred_region
        %s282 = ssub.s32 %s22, 1
        // Predicated region
        $region13: #{_lambda_.1} parent=11 // pred_check
          %p283 = pneg %p69
        $region14: #{_lambda_.1} parent=11 // pred_check_branch
          %285 = sbr.rel (%p283) target = $region16
        $region15: #{_lambda_.1} parent=11 // pred_region
          _
        $region16: #{_lambda_.1} parent=11 // pred_fallthru
          _
        // Predicated region
        $region17: #{_lambda_.1} parent=11 // pred_check
          %p286 = pneg %p90
        $region18: #{_lambda_.1} parent=11 // pred_check_branch
          %288 = sbr.rel (%p286) target = $region20
        $region19: #{_lambda_.1} parent=11 // pred_region
          _
        $region20: #{_lambda_.1} parent=11 // pred_fallthru
          _
        // Predicated region
        $region21: #{_lambda_.1} parent=11 // pred_check
          %p289 = pneg %p111
        $region22: #{_lambda_.1} parent=11 // pred_check_branch
          %291 = sbr.rel (%p289) target = $region24
        $region23: #{_lambda_.1} parent=11 // pred_region
          _
        $region24: #{_lambda_.1} parent=11 // pred_fallthru
          _
        // Predicated region
        $region25: #{_lambda_.1} parent=11 // pred_check
          %p292 = pneg %p132
        $region26: #{_lambda_.1} parent=11 // pred_check_branch
          %294 = sbr.rel (%p292) target = $region28
        $region27: #{_lambda_.1} parent=11 // pred_region
          _
        $region28: #{_lambda_.1} parent=11 // pred_fallthru
          _
        // Predicated region
        $region29: #{_lambda_.1} parent=11 // pred_check
          %p295 = pneg %p153
        $region30: #{_lambda_.1} parent=11 // pred_check_branch
          %297 = sbr.rel (%p295) target = $region32
        $region31: #{_lambda_.1} parent=11 // pred_region
          _
        $region32: #{_lambda_.1} parent=11 // pred_fallthru
          _
        // Predicated region
        $region33: #{_lambda_.1} parent=11 // pred_check
          %p298 = pneg %p174
        $region34: #{_lambda_.1} parent=11 // pred_check_branch
          %300 = sbr.rel (%p298) target = $region36
        $region35: #{_lambda_.1} parent=11 // pred_region
          %s302 = ssub.s32 16, 16
          %303 = vsyncadd [#allocation3], %s302
          %s305 = sshll.u32 [#allocation2], 4
          %s306 = int_to_ptr.vmem [resolvable:$true] %s305
          %308 = dma.hbm_to_vmem [thread:$0]  %s6, 16, %s306, [#allocation3]
        $region36: #{_lambda_.1} parent=11 // pred_fallthru
          _
        // Predicated region
        $region37: #{_lambda_.1} parent=11 // pred_check
          %p309 = pneg %p195
        $region38: #{_lambda_.1} parent=11 // pred_check_branch
          %311 = sbr.rel (%p309) target = $region40
        $region39: #{_lambda_.1} parent=11 // pred_region
          %s313 = ssub.s32 2048, 2048
          %314 = vsyncadd [#allocation6], %s313
          %s315 = sshll.u32 [#allocation5], 4
          %s316 = int_to_ptr.vmem [resolvable:$true] %s315
          %321 = dma.hbm_to_vmem [thread:$0]  %s7, 2048, %s316, [#allocation6], 128, 128, 8
        $region40: #{_lambda_.1} parent=11 // pred_fallthru
          _
        // Predicated region
        $region41: #{_lambda_.1} parent=11 // pred_check
          %p322 = pneg %p216
        $region42: #{_lambda_.1} parent=11 // pred_check_branch
          %324 = sbr.rel (%p322) target = $region44
        $region43: #{_lambda_.1} parent=11 // pred_region
          %s326 = ssub.s32 16, 16
          %327 = vsyncadd [#allocation6], %s326
          %s329 = sshll.u32 [#allocation7], 4
          %s330 = int_to_ptr.vmem [resolvable:$true] %s329
          %332 = dma.hbm_to_vmem [thread:$0]  %s8, 16, %s330, [#allocation6]
        $region44: #{_lambda_.1} parent=11 // pred_fallthru
          _
      $region12: #{_lambda_.1} parent=5 // pred_fallthru
        _
      %p333 = scmp.lt.s32.totalorder %s22, 4
      // Predicated region
      $region45: #{_lambda_.1} parent=5 // pred_check
        %p334 = pneg %p333
      $region46: #{_lambda_.1} parent=5 // pred_check_branch
        %336 = sbr.rel (%p334) target = $region48
      $region47: #{_lambda_.1} parent=5 // pred_region
        // Predicated region
        $region49: #{_lambda_.1} parent=47 // pred_check
          %p337 = pneg %p42
        $region50: #{_lambda_.1} parent=47 // pred_check_branch
          %339 = sbr.rel (%p337) target = $region52
        $region51: #{_lambda_.1} parent=47 // pred_region
          %p340 = scmp.lt.s32.totalorder %s22, 3
          %s341 = scalar_select %p340, %s22, 3
          %s342 = smul.addr %s341, 8
          %s343 = scalar_lea.vmem %s0, %s342
        $region52: #{_lambda_.1} parent=47 // pred_fallthru
          _
      $region48: #{_lambda_.1} parent=5 // pred_fallthru
        _
      %p344 = scmp.le.s32.totalorder 1, %s22
      %p345 = scmp.lt.s32.totalorder %s22, 5
      %p346 = pnand %p344, %p345
      %p347 = pneg %p346
      // Predicated region
      $region53: #{_lambda_.1} parent=5 // pred_check
        _
      $region54: #{_lambda_.1} parent=5 // pred_check_branch
        %349 = sbr.rel (%p346) target = $region56
      $region55: #{_lambda_.1} parent=5 // pred_region
        %s350 = ssub.s32 %s22, 1
        // Predicated region
        $region57: #{_lambda_.1} parent=55 // pred_check
          %p351 = pneg %p174
        $region58: #{_lambda_.1} parent=55 // pred_check_branch
          %353 = sbr.rel (%p351) target = $region60
        $region59: #{_lambda_.1} parent=55 // pred_region
          %354 = dma.done [#allocation3], 16
        $region60: #{_lambda_.1} parent=55 // pred_fallthru
          _
        // Predicated region
        $region61: #{_lambda_.1} parent=55 // pred_check
          %p355 = pneg %p195
        $region62: #{_lambda_.1} parent=55 // pred_check_branch
          %357 = sbr.rel (%p355) target = $region64
        $region63: #{_lambda_.1} parent=55 // pred_region
          %358 = dma.done [#allocation6], 2048
        $region64: #{_lambda_.1} parent=55 // pred_fallthru
          _
        // Predicated region
        $region65: #{_lambda_.1} parent=55 // pred_check
          %p359 = pneg %p216
        $region66: #{_lambda_.1} parent=55 // pred_check_branch
          %361 = sbr.rel (%p359) target = $region68
        $region67: #{_lambda_.1} parent=55 // pred_region
          %362 = dma.done [#allocation6], 16
        $region68: #{_lambda_.1} parent=55 // pred_fallthru
          _
        %p363 = scmp.lt.s32.totalorder %s27, 3
        %s364 = scalar_select %p363, %s27, 3
        %s365 = smul.addr %s364, 8
        %s366 = scalar_lea.vmem %s0, %s365
        %p367 = pneg %p48
        %p368 = pneg %p45
        %p369 = pneg %p69
        %p370 = pneg %p66
        %p371 = pneg %p90
        %p372 = pneg %p87
        %p373 = pneg %p111
        %p374 = pneg %p108
        %p375 = pneg %p132
        %p376 = pneg %p129
        %p377 = pneg %p153
        %p378 = pneg %p150
        %p379 = pneg %p174
        %p380 = pneg %p171
        %p381 = pneg %p195
        %p382 = pneg %p192
        %p383 = pneg %p216
        %p384 = pneg %p213
        %p385 = pneg %p242
        %p386 = pneg %p239
        %s387 = sand.u32 %s229, 1
        %s388 = scalar_lea.sflag [#allocation4], %s387
        %s389 = sand.u32 %s229, 1
        %s390 = smul.addr %s389, 8
        %s391 = scalar_lea.vmem [#allocation8], %s390
        %p392 = pneg %p268
        %p393 = pneg %p265
        %p394 = scmp.lt.s32.totalorder %s27, 3
        %s395 = scalar_select %p394, %s27, 3
        %s396 = smul.addr %s395, 8
        %s397 = scalar_lea.vmem %s10, %s396
        %p398 = scmp.lt.s32.totalorder %s27, 3
        %s399 = scalar_select %p398, %s27, 3
        %s400 = smul.addr %s399, 8
        %s401 = scalar_lea.vmem %s0, %s400
        %p402 = scmp.lt.s32.totalorder %s27, 3
        %s403 = scalar_select %p402, %s27, 3
        %s404 = smul.addr %s403, 8
        %s405 = scalar_lea.vmem %s10, %s404
        %v406 = vld [vmem:[%s401] sm:$0xff]
        %v407 = vld [vmem:[%s1] sm:$0xff]
        %v408 = vld [vmem:[%s1 + $0x8] sm:$0xff]
        %v409 = vld [vmem:[%s1 + $0x10] sm:$0xff]
        %v410 = vld [vmem:[%s1 + $0x18] sm:$0xff]
        %v411 = vld [vmem:[%s2] sm:$0x1]
        %v413 = vlaneseq
        %v414 = vshrl.u32 %v413, 7
        %v415 = vsub.s32 0, %v414
        %v416 = vrot.slane %v411, %v415
        %vm418 = vcmask 261120
        %v420 = vsel %vm418, %v406, 0
        %422 = vmatprep.subr.mxu0 0.0
        %423 = vmatpush1.msra.mxu0 %v407
        %424 = vmatprep.subr.mxu0 0.0
        %425 = vmatpush1.msra.mxu0 %v408
        %426 = vmatprep.subr.mxu0 0.0
        %427 = vmatpush1.msra.mxu0 %v409
        %428 = vmatprep.subr.mxu0 0.0
        %429 = vmatpush1.msra.mxu0 %v410
        %430 = vmatprep.subr.mxu0 0.0
        %431 = vmatpush1.msra.mxu0 0.0
        %432 = vmatprep.subr.mxu0 0.0
        %433 = vmatpush1.msra.mxu0 0.0
        %434 = vmatprep.subr.mxu0 0.0
        %435 = vmatpush1.msra.mxu0 0.0
        %436 = vmatprep.subr.mxu0 0.0
        %437 = vmatpush1.msra.mxu0 0.0
        %438 = vmatprep.subr.mxu0 0.0
        %439 = vmatpush1.msra.mxu0 0.0
        %440 = vmatprep.subr.mxu0 0.0
        %441 = vmatpush1.msra.mxu0 0.0
        %442 = vmatprep.subr.mxu0 0.0
        %443 = vmatpush1.msra.mxu0 0.0
        %444 = vmatprep.subr.mxu0 0.0
        %445 = vmatpush1.msra.mxu0 0.0
        %446 = vmatprep.subr.mxu0 0.0
        %447 = vmatpush1.msra.mxu0 0.0
        %448 = vmatprep.subr.mxu0 0.0
        %449 = vmatpush1.msra.mxu0 0.0
        %450 = vmatprep.subr.mxu0 0.0
        %451 = vmatpush1.msra.mxu0 0.0
        %452 = vmatprep.subr.mxu0 0.0
        %453 = vmatpush1.msra.mxu0 0.0
        %454 = vmatprep.subr.mxu0 0.0
        %455 = vmatpush1.msra.mxu0 0.0
        %456 = vmatprep.subr.mxu0 0.0
        %457 = vmatpush1.msra.mxu0 0.0
        %458 = vmatprep.subr.mxu0 0.0
        %459 = vmatpush1.msra.mxu0 0.0
        %460 = vmatprep.subr.mxu0 0.0
        %461 = vmatpush1.msra.mxu0 0.0
        %462 = vmatprep.subr.mxu0 0.0
        %463 = vmatpush1.msra.mxu0 0.0
        %464 = vmatprep.subr.mxu0 0.0
        %465 = vmatpush1.msra.mxu0 0.0
        %466 = vmatprep.subr.mxu0 0.0
        %467 = vmatpush1.msra.mxu0 0.0
        %468 = vmatprep.subr.mxu0 0.0
        %469 = vmatpush1.msra.mxu0 0.0
        %470 = vmatprep.subr.mxu0 0.0
        %471 = vmatpush1.msra.mxu0 0.0
        %472 = vmatprep.subr.mxu0 0.0
        %473 = vmatpush1.msra.mxu0 0.0
        %474 = vmatprep.subr.mxu0 0.0
        %475 = vmatpush1.msra.mxu0 0.0
        %476 = vmatprep.subr.mxu0 0.0
        %477 = vmatpush1.msra.mxu0 0.0
        %478 = vmatprep.subr.mxu0 0.0
        %479 = vmatpush1.msra.mxu0 0.0
        %480 = vmatprep.subr.mxu0 0.0
        %481 = vmatpush1.msra.mxu0 0.0
        %482 = vmatprep.subr.mxu0 0.0
        %483 = vmatpush1.msra.mxu0 0.0
        %484 = vmatprep.subr.mxu0 0.0
        %485 = vmatpush1.msra.mxu0 0.0
        %486 = vmatprep.mubr.f32.mxu0 0.0
        %487 = vmatmul.mubr.f32.gmra.mrb[0].mxu0 %v420
        %v488 = vpop.f32.mrb[0].mxu0
        %v489 = vadd.f32 %v416, %v488
        %v490 = vpop.f32.mrb[0].mxu0
        %491 = vdwg.mxu0
        %v492 = vld [vmem:[%s5] sm:$0xff]
        %v493 = vld [vmem:[%s5 + $0x8] sm:$0xff]
        %v494 = vld [vmem:[#allocation2] sm:$0x1]
        %v496 = vlaneseq
        %v497 = vshrl.u32 %v496, 7
        %v498 = vsub.s32 0, %v497
        %v499 = vrot.slane %v494, %v498
        %vm501 = vcmask 130048
        %v503 = vsel %vm501, %v489, 0
        %505 = vmatprep.subr.mxu0 0.0
        %506 = vmatpush1.msra.mxu0 %v492
        %507 = vmatprep.subr.mxu0 0.0
        %508 = vmatpush1.msra.mxu0 %v493
        %509 = vmatprep.subr.mxu0 0.0
        %510 = vmatpush1.msra.mxu0 0.0
        %511 = vmatprep.subr.mxu0 0.0
        %512 = vmatpush1.msra.mxu0 0.0
        %513 = vmatprep.subr.mxu0 0.0
        %514 = vmatpush1.msra.mxu0 0.0
        %515 = vmatprep.subr.mxu0 0.0
        %516 = vmatpush1.msra.mxu0 0.0
        %517 = vmatprep.subr.mxu0 0.0
        %518 = vmatpush1.msra.mxu0 0.0
        %519 = vmatprep.subr.mxu0 0.0
        %520 = vmatpush1.msra.mxu0 0.0
        %521 = vmatprep.subr.mxu0 0.0
        %522 = vmatpush1.msra.mxu0 0.0
        %523 = vmatprep.subr.mxu0 0.0
        %524 = vmatpush1.msra.mxu0 0.0
        %525 = vmatprep.subr.mxu0 0.0
        %526 = vmatpush1.msra.mxu0 0.0
        %527 = vmatprep.subr.mxu0 0.0
        %528 = vmatpush1.msra.mxu0 0.0
        %529 = vmatprep.subr.mxu0 0.0
        %530 = vmatpush1.msra.mxu0 0.0
        %531 = vmatprep.subr.mxu0 0.0
        %532 = vmatpush1.msra.mxu0 0.0
        %533 = vmatprep.subr.mxu0 0.0
        %534 = vmatpush1.msra.mxu0 0.0
        %535 = vmatprep.subr.mxu0 0.0
        %536 = vmatpush1.msra.mxu0 0.0
        %537 = vmatprep.subr.mxu0 0.0
        %538 = vmatpush1.msra.mxu0 0.0
        %539 = vmatprep.subr.mxu0 0.0
        %540 = vmatpush1.msra.mxu0 0.0
        %541 = vmatprep.subr.mxu0 0.0
        %542 = vmatpush1.msra.mxu0 0.0
        %543 = vmatprep.subr.mxu0 0.0
        %544 = vmatpush1.msra.mxu0 0.0
        %545 = vmatprep.subr.mxu0 0.0
        %546 = vmatpush1.msra.mxu0 0.0
        %547 = vmatprep.subr.mxu0 0.0
        %548 = vmatpush1.msra.mxu0 0.0
        %549 = vmatprep.subr.mxu0 0.0
        %550 = vmatpush1.msra.mxu0 0.0
        %551 = vmatprep.subr.mxu0 0.0
        %552 = vmatpush1.msra.mxu0 0.0
        %553 = vmatprep.subr.mxu0 0.0
        %554 = vmatpush1.msra.mxu0 0.0
        %555 = vmatprep.subr.mxu0 0.0
        %556 = vmatpush1.msra.mxu0 0.0
        %557 = vmatprep.subr.mxu0 0.0
        %558 = vmatpush1.msra.mxu0 0.0
        %559 = vmatprep.subr.mxu0 0.0
        %560 = vmatpush1.msra.mxu0 0.0
        %561 = vmatprep.subr.mxu0 0.0
        %562 = vmatpush1.msra.mxu0 0.0
        %563 = vmatprep.subr.mxu0 0.0
        %564 = vmatpush1.msra.mxu0 0.0
        %565 = vmatprep.subr.mxu0 0.0
        %566 = vmatpush1.msra.mxu0 0.0
        %567 = vmatprep.subr.mxu0 0.0
        %568 = vmatpush1.msra.mxu0 0.0
        %569 = vmatprep.mubr.f32.mxu0 0.0
        %570 = vmatmul.mubr.f32.gmra.mrb[0].mxu0 %v503
        %v571 = vpop.f32.mrb[0].mxu0
        %v572 = vadd.f32 %v499, %v571
        %v573 = vpop.f32.mrb[0].mxu0
        %574 = vdwg.mxu0
        %v575 = vmax.f32 %v572, 0.0
        %v576 = vld [vmem:[#allocation5] sm:$0xff]
        %v577 = vld [vmem:[#allocation5 + $0x8] sm:$0xff]
        %v578 = vld [vmem:[#allocation5 + $0x10] sm:$0xff]
        %v579 = vld [vmem:[#allocation5 + $0x18] sm:$0xff]
        %v580 = vld [vmem:[#allocation5 + $0x20] sm:$0xff]
        %v581 = vld [vmem:[#allocation5 + $0x28] sm:$0xff]
        %v582 = vld [vmem:[#allocation5 + $0x30] sm:$0xff]
        %v583 = vld [vmem:[#allocation5 + $0x38] sm:$0xff]
        %v584 = vld [vmem:[#allocation5 + $0x40] sm:$0xff]
        %v585 = vld [vmem:[#allocation5 + $0x48] sm:$0xff]
        %v586 = vld [vmem:[#allocation5 + $0x50] sm:$0xff]
        %v587 = vld [vmem:[#allocation5 + $0x58] sm:$0xff]
        %v588 = vld [vmem:[#allocation5 + $0x60] sm:$0xff]
        %v589 = vld [vmem:[#allocation5 + $0x68] sm:$0xff]
        %v590 = vld [vmem:[#allocation5 + $0x70] sm:$0xff]
        %v591 = vld [vmem:[#allocation5 + $0x78] sm:$0xff]
        %v592 = vld [vmem:[#allocation7] sm:$0x1]
        %v594 = vlaneseq
        %v595 = vshrl.u32 %v594, 7
        %v596 = vsub.s32 0, %v595
        %v597 = vrot.slane %v592, %v596
        %599 = vmatprep.subr.mxu0 0.0
        %600 = vmatpush1.msra.mxu0 %v576
        %601 = vmatprep.subr.mxu0 0.0
        %602 = vmatpush1.msra.mxu0 %v577
        %603 = vmatprep.subr.mxu0 0.0
        %604 = vmatpush1.msra.mxu0 %v578
        %605 = vmatprep.subr.mxu0 0.0
        %606 = vmatpush1.msra.mxu0 %v579
        %607 = vmatprep.subr.mxu0 0.0
        %608 = vmatpush1.msra.mxu0 %v580
        %609 = vmatprep.subr.mxu0 0.0
        %610 = vmatpush1.msra.mxu0 %v581
        %611 = vmatprep.subr.mxu0 0.0
        %612 = vmatpush1.msra.mxu0 %v582
        %613 = vmatprep.subr.mxu0 0.0
        %614 = vmatpush1.msra.mxu0 %v583
        %615 = vmatprep.subr.mxu0 0.0
        %616 = vmatpush1.msra.mxu0 %v584
        %617 = vmatprep.subr.mxu0 0.0
        %618 = vmatpush1.msra.mxu0 %v585
        %619 = vmatprep.subr.mxu0 0.0
        %620 = vmatpush1.msra.mxu0 %v586
        %621 = vmatprep.subr.mxu0 0.0
        %622 = vmatpush1.msra.mxu0 %v587
        %623 = vmatprep.subr.mxu0 0.0
        %624 = vmatpush1.msra.mxu0 %v588
        %625 = vmatprep.subr.mxu0 0.0
        %626 = vmatpush1.msra.mxu0 %v589
        %627 = vmatprep.subr.mxu0 0.0
        %628 = vmatpush1.msra.mxu0 %v590
        %629 = vmatprep.subr.mxu0 0.0
        %630 = vmatpush1.msra.mxu0 %v591
        %631 = vmatprep.subr.mxu0 0.0
        %632 = vmatpush1.msra.mxu0 0.0
        %633 = vmatprep.subr.mxu0 0.0
        %634 = vmatpush1.msra.mxu0 0.0
        %635 = vmatprep.subr.mxu0 0.0
        %636 = vmatpush1.msra.mxu0 0.0
        %637 = vmatprep.subr.mxu0 0.0
        %638 = vmatpush1.msra.mxu0 0.0
        %639 = vmatprep.subr.mxu0 0.0
        %640 = vmatpush1.msra.mxu0 0.0
        %641 = vmatprep.subr.mxu0 0.0
        %642 = vmatpush1.msra.mxu0 0.0
        %643 = vmatprep.subr.mxu0 0.0
        %644 = vmatpush1.msra.mxu0 0.0
        %645 = vmatprep.subr.mxu0 0.0
        %646 = vmatpush1.msra.mxu0 0.0
        %647 = vmatprep.subr.mxu0 0.0
        %648 = vmatpush1.msra.mxu0 0.0
        %649 = vmatprep.subr.mxu0 0.0
        %650 = vmatpush1.msra.mxu0 0.0
        %651 = vmatprep.subr.mxu0 0.0
        %652 = vmatpush1.msra.mxu0 0.0
        %653 = vmatprep.subr.mxu0 0.0
        %654 = vmatpush1.msra.mxu0 0.0
        %655 = vmatprep.subr.mxu0 0.0
        %656 = vmatpush1.msra.mxu0 0.0
        %657 = vmatprep.subr.mxu0 0.0
        %658 = vmatpush1.msra.mxu0 0.0
        %659 = vmatprep.subr.mxu0 0.0
        %660 = vmatpush1.msra.mxu0 0.0
        %661 = vmatprep.subr.mxu0 0.0
        %662 = vmatpush1.msra.mxu0 0.0
        %663 = vmatprep.mubr.f32.mxu0 0.0
        %664 = vmatmul.mubr.f32.gmra.mrb[0].mxu0 %v575
        %v665 = vpop.f32.mrb[0].mxu0
        %v666 = vadd.f32 %v597, %v665
        %v667 = vpop.f32.mrb[0].mxu0
        %668 = vdwg.mxu0
        %v669 = vld [vmem:[%s3] sm:$0xff]
        %v670 = vld [vmem:[%s3 + $0x8] sm:$0xff]
        %v671 = vld [vmem:[%s4] sm:$0x1]
        %v673 = vlaneseq
        %v674 = vshrl.u32 %v673, 7
        %v675 = vsub.s32 0, %v674
        %v676 = vrot.slane %v671, %v675
        %678 = vmatprep.subr.mxu0 0.0
        %679 = vmatpush1.msra.mxu0 %v669
        %680 = vmatprep.subr.mxu0 0.0
        %681 = vmatpush1.msra.mxu0 %v670
        %682 = vmatprep.subr.mxu0 0.0
        %683 = vmatpush1.msra.mxu0 0.0
        %684 = vmatprep.subr.mxu0 0.0
        %685 = vmatpush1.msra.mxu0 0.0
        %686 = vmatprep.subr.mxu0 0.0
        %687 = vmatpush1.msra.mxu0 0.0
        %688 = vmatprep.subr.mxu0 0.0
        %689 = vmatpush1.msra.mxu0 0.0
        %690 = vmatprep.subr.mxu0 0.0
        %691 = vmatpush1.msra.mxu0 0.0
        %692 = vmatprep.subr.mxu0 0.0
        %693 = vmatpush1.msra.mxu0 0.0
        %694 = vmatprep.subr.mxu0 0.0
        %695 = vmatpush1.msra.mxu0 0.0
        %696 = vmatprep.subr.mxu0 0.0
        %697 = vmatpush1.msra.mxu0 0.0
        %698 = vmatprep.subr.mxu0 0.0
        %699 = vmatpush1.msra.mxu0 0.0
        %700 = vmatprep.subr.mxu0 0.0
        %701 = vmatpush1.msra.mxu0 0.0
        %702 = vmatprep.subr.mxu0 0.0
        %703 = vmatpush1.msra.mxu0 0.0
        %704 = vmatprep.subr.mxu0 0.0
        %705 = vmatpush1.msra.mxu0 0.0
        %706 = vmatprep.subr.mxu0 0.0
        %707 = vmatpush1.msra.mxu0 0.0
        %708 = vmatprep.subr.mxu0 0.0
        %709 = vmatpush1.msra.mxu0 0.0
        %710 = vmatprep.subr.mxu0 0.0
        %711 = vmatpush1.msra.mxu0 0.0
        %712 = vmatprep.subr.mxu0 0.0
        %713 = vmatpush1.msra.mxu0 0.0
        %714 = vmatprep.subr.mxu0 0.0
        %715 = vmatpush1.msra.mxu0 0.0
        %716 = vmatprep.subr.mxu0 0.0
        %717 = vmatpush1.msra.mxu0 0.0
        %718 = vmatprep.subr.mxu0 0.0
        %719 = vmatpush1.msra.mxu0 0.0
        %720 = vmatprep.subr.mxu0 0.0
        %721 = vmatpush1.msra.mxu0 0.0
        %722 = vmatprep.subr.mxu0 0.0
        %723 = vmatpush1.msra.mxu0 0.0
        %724 = vmatprep.subr.mxu0 0.0
        %725 = vmatpush1.msra.mxu0 0.0
        %726 = vmatprep.subr.mxu0 0.0
        %727 = vmatpush1.msra.mxu0 0.0
        %728 = vmatprep.subr.mxu0 0.0
        %729 = vmatpush1.msra.mxu0 0.0
        %730 = vmatprep.subr.mxu0 0.0
        %731 = vmatpush1.msra.mxu0 0.0
        %732 = vmatprep.subr.mxu0 0.0
        %733 = vmatpush1.msra.mxu0 0.0
        %734 = vmatprep.subr.mxu0 0.0
        %735 = vmatpush1.msra.mxu0 0.0
        %736 = vmatprep.subr.mxu0 0.0
        %737 = vmatpush1.msra.mxu0 0.0
        %738 = vmatprep.subr.mxu0 0.0
        %739 = vmatpush1.msra.mxu0 0.0
        %740 = vmatprep.subr.mxu0 0.0
        %741 = vmatpush1.msra.mxu0 0.0
        %742 = vmatprep.mubr.f32.mxu0 0.0
        %743 = vmatmul.mubr.f32.gmra.mrb[0].mxu0 %v503
        %v744 = vpop.f32.mrb[0].mxu0
        %v745 = vadd.f32 %v676, %v744
        %v746 = vpop.f32.mrb[0].mxu0
        %747 = vdwg.mxu0
        %748 = vst.msk [vmem:[%s391] sm:$0xff] %vm418, %v745
        %749 = vst [vmem:[%s405] sm:$0xff] %v666
        %s750 = sand.u32 %s229, 1
        %s751 = scalar_lea.sflag [#allocation4], %s750
        %s752 = sand.u32 %s229, 1
        %s753 = smul.addr %s752, 8
        %s754 = scalar_lea.vmem [#allocation8], %s753
        %p755 = scmp.lt.s32.totalorder %s27, 3
        %s756 = scalar_select %p755, %s27, 3
        %s757 = smul.addr %s756, 8
        %s758 = scalar_lea.vmem %s10, %s757
        // Predicated region
        $region69: #{_lambda_.1} parent=55 // pred_check
          %p759 = pneg %p239
        $region70: #{_lambda_.1} parent=55 // pred_check_branch
          %761 = sbr.rel (%p759) target = $region72
        $region71: #{_lambda_.1} parent=55 // pred_region
          %s763 = ssub.s32 128, 128
          %764 = vsyncadd %s751, %s763
          %s765 = smul.addr %s27, 128
          %s766 = scalar_lea.hbm %s9, %s765
          %s768 = sshll.u32 %s754, 4
          %s769 = int_to_ptr.vmem [resolvable:$true] %s768
          %771 = dma.vmem_to_hbm [thread:$0]  %s769, 128, %s766, %s751
        $region72: #{_lambda_.1} parent=55 // pred_fallthru
          _
        // Predicated region
        $region73: #{_lambda_.1} parent=55 // pred_check
          %p772 = pneg %p265
        $region74: #{_lambda_.1} parent=55 // pred_check_branch
          %774 = sbr.rel (%p772) target = $region76
        $region75: #{_lambda_.1} parent=55 // pred_region
          _
        $region76: #{_lambda_.1} parent=55 // pred_fallthru
          _
      $region56: #{_lambda_.1} parent=5 // pred_fallthru
        _
      %p775 = scmp.le.s32.totalorder 2, %s22
      // Predicated region
      $region77: #{_lambda_.1} parent=5 // pred_check
        %p776 = pneg %p775
      $region78: #{_lambda_.1} parent=5 // pred_check_branch
        %778 = sbr.rel (%p776) target = $region80
      $region79: #{_lambda_.1} parent=5 // pred_region
        %s779 = ssub.s32 %s22, 2
        // Predicated region
        $region81: #{_lambda_.1} parent=79 // pred_check
          %p780 = pneg %p245
        $region82: #{_lambda_.1} parent=79 // pred_check_branch
          %782 = sbr.rel (%p780) target = $region84
        $region83: #{_lambda_.1} parent=79 // pred_region
          %s783 = sand.u32 %s230, 1
          %s784 = scalar_lea.sflag [#allocation4], %s783
          %s785 = sand.u32 %s230, 1
          %s786 = smul.addr %s785, 8
          %s787 = scalar_lea.vmem [#allocation8], %s786
          %788 = dma.done %s784, 128
        $region84: #{_lambda_.1} parent=79 // pred_fallthru
          _
        // Predicated region
        $region85: #{_lambda_.1} parent=79 // pred_check
          %p789 = pneg %p271
        $region86: #{_lambda_.1} parent=79 // pred_check_branch
          %791 = sbr.rel (%p789) target = $region88
        $region87: #{_lambda_.1} parent=79 // pred_region
          %p792 = scmp.lt.s32.totalorder %s28, 3
          %s793 = scalar_select %p792, %s28, 3
          %s794 = smul.addr %s793, 8
          %s795 = scalar_lea.vmem %s10, %s794
        $region88: #{_lambda_.1} parent=79 // pred_fallthru
          _
      $region80: #{_lambda_.1} parent=5 // pred_fallthru
        _
    $region6: #{_lambda_.1} parent=1 // loop_footer
      %s26 = sadd.s32 1, %s22
    $region7: #{_lambda_.1} parent=1 // loop_footer_branch
      %21 = sbr.rel target = $region3
    $region8: #{_lambda_.1} parent=1 // loop_exit
      _
    %796 = vsyncpa [#allocation3], 1
    %s797 = scalar_lea.sflag [#allocation3], 1
    %798 = vsyncpa %s797, 1
    %799 = vsyncpa [#allocation6], 1
    %800 = vsyncpa [#allocation4], 1
    %s801 = scalar_lea.sflag [#allocation4], 1
    %802 = vsyncpa %s801, 1

</llo_original>
